<compile_context>
chip_gen: v6e
topology: v6e:2x2x1
jax: 0.10.0
libtpu: 0.0.40
codegen_flags: <defaults>
</compile_context>

<pallas_src>
import math
import functools

import numpy as np
import jax
import jax.numpy as jnp
from jax.experimental import pallas as pl
from jax.experimental.pallas import tpu as pltpu


# ----------------------------------------------------------------------------
# Parameter-sharing indices (reconstruction of get_scan_equivariance_indices).
# Host-side Python glue; not part of the kernel hot path.
# ----------------------------------------------------------------------------
def _perm_for(g, dim, eq_word_indices):
    p = list(range(dim))
    k = len(eq_word_indices)
    for a in range(k):
        src = eq_word_indices[a]
        dst = eq_word_indices[(a + g) % k]
        if src < dim and dst < dim:
            p[src] = dst
    return p


def get_scan_equivariance_indices(in_dim, out_dim, eq_word_indices, G,
                                  group_type='cyclic'):
    # TODO(synk): only the 'cyclic' group_type is reconstructed here.
    assigned = [[-1] * out_dim for _ in range(in_dim)]
    next_id = 0
    indices = []
    for i in range(in_dim):
        for j in range(out_dim):
            if assigned[i][j] == -1:
                oid = next_id
                next_id += 1
                for g in range(G):
                    pi = _perm_for(g, in_dim, eq_word_indices)
                    pj = _perm_for(g, out_dim, eq_word_indices)
                    assigned[pi[i]][pj[j]] = oid
            indices.append(assigned[i][j])
    return indices


# ----------------------------------------------------------------------------
# Pallas kernels: tiled out = x @ w_eq (+ bias), f32 accumulation in VMEM.
# Grid = (Mp // TM, Np // TN, Kp // TK); K is the reduction axis (last).
# ----------------------------------------------------------------------------
def _matmul_bias_kernel(x_ref, w_ref, b_ref, o_ref, acc_ref):
    k = pl.program_id(2)

    @pl.when(k == 0)
    def _():
        acc_ref[...] = jnp.zeros_like(acc_ref)

    acc_ref[...] += jnp.dot(x_ref[...], w_ref[...],
                            preferred_element_type=jnp.float32)

    @pl.when(k == pl.num_programs(2) - 1)
    def _():
        # Bias added exactly once per output tile, in the finalize branch.
        o_ref[...] = (acc_ref[...] + b_ref[...]).astype(o_ref.dtype)


def _matmul_kernel(x_ref, w_ref, o_ref, acc_ref):
    k = pl.program_id(2)

    @pl.when(k == 0)
    def _():
        acc_ref[...] = jnp.zeros_like(acc_ref)

    acc_ref[...] += jnp.dot(x_ref[...], w_ref[...],
                            preferred_element_type=jnp.float32)

    @pl.when(k == pl.num_programs(2) - 1)
    def _():
        o_ref[...] = acc_ref[...].astype(o_ref.dtype)


def _round_up(x, m):
    return ((x + m - 1) // m) * m


def _default_tiles(M, K, N, compute_dtype):
    # Sublane granularity: 8 for f32, 16 for bf16 (packed rows).
    sub = 16 if compute_dtype == jnp.bfloat16 else 8
    # Tiles never exceed the rounded-up problem dims (minimizes padding), and
    # are capped so the double-buffered footprint stays ~7 MiB f32 — inside the
    # scoped-VMEM default everywhere, including v7x's 64 MiB physical VMEM.
    TM = min(256, _round_up(M, sub))
    TK = min(512, _round_up(K, 128))
    TN = min(512, _round_up(N, 128))
    return TM, TK, TN


def _pad2d(a, rows, cols, dtype):
    """Pad to (rows, cols) with zeros and cast; no-op if already aligned."""
    r, c = a.shape
    if r == rows and c == cols and a.dtype == jnp.dtype(dtype):
        return a
    return jnp.pad(a.astype(dtype), ((0, rows - r), (0, cols - c)))


@functools.partial(jax.jit, static_argnames=("compute_dtype", "tiles"))
def equi_scan_linear_forward(x, w_eq, b_eq=None, *,
                             compute_dtype=jnp.float32, tiles=None):
    """out = x @ w_eq (+ b_eq), via a tiled Pallas TPU matmul kernel."""
    M, K = x.shape
    K2, N = w_eq.shape
    assert K == K2, (x.shape, w_eq.shape)
    out_dtype = x.dtype

    if tiles is None:
        TM, TK, TN = _default_tiles(M, K, N, compute_dtype)
    else:
        TM, TK, TN = tiles

    Mp = _round_up(M, TM)
    Kp = _round_up(K, TK)
    Np = _round_up(N, TN)

    # Pad to lane-dense, (8,128)-aligned tiles; padded K contributes zeros, so
    # the reduction is exact; padded M/N rows/cols are sliced off at the end.
    xp = _pad2d(x, Mp, Kp, compute_dtype)
    wp = _pad2d(w_eq, Kp, Np, compute_dtype)

    has_bias = b_eq is not None
    if has_bias:
        bp = _pad2d(b_eq.reshape(1, N), 1, Np, jnp.float32)

    grid = (Mp // TM, Np // TN, Kp // TK)

    itemsize = jnp.dtype(compute_dtype).itemsize
    cost = pl.CostEstimate(
        flops=2 * Mp * Kp * Np,
        transcendentals=0,
        bytes_accessed=(Mp * Kp + Kp * Np) * itemsize
                       + Mp * Np * jnp.dtype(out_dtype).itemsize
                       + (Np * 4 if has_bias else 0),
    )

    in_specs = [
        pl.BlockSpec((TM, TK), lambda i, j, k: (i, k)),
        pl.BlockSpec((TK, TN), lambda i, j, k: (k, j)),
    ]
    if has_bias:
        in_specs.append(pl.BlockSpec((1, TN), lambda i, j, k: (0, j)))
        kernel = _matmul_bias_kernel
        args = (xp, wp, bp)
    else:
        kernel = _matmul_kernel
        args = (xp, wp)

    out = pl.pallas_call(
        kernel,
        out_shape=jax.ShapeDtypeStruct((Mp, Np), out_dtype),
        grid_spec=pltpu.PrefetchScalarGridSpec(
            num_scalar_prefetch=0,
            grid=grid,
            in_specs=in_specs,
            out_specs=pl.BlockSpec((TM, TN), lambda i, j, k: (i, j)),
            scratch_shapes=[pltpu.VMEM((TM, TN), jnp.float32)],
        ),
        compiler_params=pltpu.CompilerParams(
            dimension_semantics=("parallel", "parallel", "arbitrary"),
            vmem_limit_bytes=32 * 1024 * 1024,
        ),
        cost_estimate=cost,
    )(*args)

    if Mp == M and Np == N:
        return out
    return out[:M, :N]


def equi_linear_apply(x, w_eq, b_eq=None, *, compute_dtype=jnp.float32,
                      tiles=None, force_pallas=True):
    """Dispatch: extremely tiny problems are cheaper on plain XLA (launch +
    per-grid-step overhead dominates); everything else uses the Pallas kernel."""
    M, K = x.shape
    N = w_eq.shape[1]
    if not force_pallas and (M * K * N) < (128 * 128 * 128):
        out = x @ w_eq
        return out + b_eq[None, :] if b_eq is not None else out
    return equi_scan_linear_forward(x, w_eq, b_eq,
                                    compute_dtype=compute_dtype, tiles=tiles)


# ----------------------------------------------------------------------------
# Module-equivalent setup (deterministic init, no checkpoint load).
# ----------------------------------------------------------------------------
class EquiSCANLinearJAX:
    def __init__(self, input_dim, output_dim, G, eq_word_indices=(2, 7),
                 bias=True, group_type='cyclic', key=None,
                 compute_dtype=jnp.float32, force_pallas=True):
        self.input_dim = input_dim
        self.output_dim = output_dim
        self.compute_dtype = compute_dtype
        self.force_pallas = force_pallas

        self.eq_indices = np.asarray(
            get_scan_equivariance_indices(input_dim, output_dim,
                                          list(eq_word_indices), G, group_type),
            dtype=np.int32)
        self.bias_eq_indices = np.asarray(
            get_scan_equivariance_indices(1, output_dim,
                                          list(eq_word_indices), G, group_type),
            dtype=np.int32)

        n_w = int(self.eq_indices.max()) + 1
        n_b = int(self.bias_eq_indices.max()) + 1
        stdv = 1.0 / math.sqrt(input_dim * output_dim)

        if key is None:
            key = jax.random.PRNGKey(0)
        k_w, k_b = jax.random.split(key, 2)
        self.weight = jax.random.uniform(k_w, (n_w,), jnp.float32,
                                         minval=-stdv, maxval=stdv)
        self.bias = (jax.random.uniform(k_b, (n_b,), jnp.float32,
                                        minval=-stdv, maxval=stdv)
                     if bias else None)

        # Hoisted gather: materialize the full equivariant weight matrix and
        # bias vector once (they only change when self.weight/self.bias change),
        # instead of re-gathering on every forward call.
        self.w_eq = jnp.take(self.weight, jnp.asarray(self.eq_indices)).reshape(
            input_dim, output_dim)
        self.b_eq = (jnp.take(self.bias, jnp.asarray(self.bias_eq_indices))
                     if bias else None)

    def __call__(self, x):
        return equi_linear_apply(x, self.w_eq, self.b_eq,
                                 compute_dtype=self.compute_dtype,
                                 force_pallas=self.force_pallas)


if __name__ == "__main__":
    key = jax.random.PRNGKey(0)
    k_mod, k_x, k_x2, k_w2, k_b2 = jax.random.split(key, 5)

    # ---- Test 1: module-consistent small shapes (vocab 16, 8 rows). --------
    input_dim = 16
    output_dim = 16
    G = 2
    N_rows = 8

    module = EquiSCANLinearJAX(input_dim, output_dim, G,
                               eq_word_indices=(2, 7), bias=True,
                               group_type='cyclic', key=k_mod,
                               force_pallas=True)

    x = jax.random.normal(k_x, (N_rows, input_dim), jnp.float32)
    out = jax.block_until_ready(module(x))

    ref = x @ module.w_eq + module.b_eq[None, :]
    np.testing.assert_allclose(np.asarray(out), np.asarray(ref),
                               rtol=1e-4, atol=1e-5)

    # ---- Test 2: no-bias path, same shapes (exercise the second kernel). ---
    module_nb = EquiSCANLinearJAX(input_dim, output_dim, G,
                                  eq_word_indices=(2, 7), bias=False,
                                  group_type='cyclic', key=k_mod,
                                  force_pallas=True)
    out_nb = jax.block_until_ready(module_nb(x))
    ref_nb = x @ module_nb.w_eq
    np.testing.assert_allclose(np.asarray(out_nb), np.asarray(ref_nb),
                               rtol=1e-4, atol=1e-5)

    # ---- Test 3: exercise multi-tile grid, K-accumulation and padding. -----
    M2, K2, N2 = 40, 300, 260
    x2 = jax.random.normal(k_x2, (M2, K2), jnp.float32)
    w2 = jax.random.normal(k_w2, (K2, N2), jnp.float32) * 0.05
    b2 = jax.random.normal(k_b2, (N2,), jnp.float32)

    out2 = jax.block_until_ready(
        equi_scan_linear_forward(x2, w2, b2, tiles=(16, 128, 128)))
    ref2 = jnp.dot(x2, w2, precision=jax.lax.Precision.HIGHEST) + b2[None, :]
    # Looser tolerance: MXU f32 matmul passes may differ slightly in rounding
    # from the XLA reference; still catches structural bugs (bias per-K-step,
    # missing K tiles, bad index maps).
    np.testing.assert_allclose(np.asarray(out2), np.asarray(ref2),
                               rtol=1e-2, atol=1e-2)

    print("KERNEL_OK")
</pallas_src>

<mosaic_0001>
module attributes {stable_mosaic.version = 11 : i64} {
  func.func @_matmul_bias_kernel(%arg0: i32, %arg1: i32, %arg2: i32, %arg3: memref<8x128xf32, #tpu.memory_space<vmem>>, %arg4: memref<128x128xf32, #tpu.memory_space<vmem>>, %arg5: memref<1x128xf32, #tpu.memory_space<vmem>>, %arg6: memref<8x128xf32, #tpu.memory_space<vmem>>, %arg7: memref<8x128xf32, #tpu.memory_space<vmem>>) attributes {dimension_semantics = [#tpu.dimension_semantics<parallel>, #tpu.dimension_semantics<parallel>, #tpu.dimension_semantics<arbitrary>], iteration_bounds = array<i64: 1, 1, 1>, scalar_prefetch = 0 : i64, scratch_operands = 1 : i64, tpu.core_type = #tpu.core_type<tc>, window_params = [{transform_indices = @transform_0, window_bounds = array<i64: 8, 128>}, {transform_indices = @transform_1, window_bounds = array<i64: 128, 128>}, {transform_indices = @transform_2, window_bounds = array<i64: 1, 128>}, {transform_indices = @transform_3, window_bounds = array<i64: 8, 128>}]} {
    %c0_i32 = arith.constant 0 : i32
    %0 = arith.cmpi eq, %arg2, %c0_i32 : i32
    %1 = arith.extui %0 : i1 to i32
    %c0_i32_0 = arith.constant 0 : i32
    %2 = arith.cmpi ne, %1, %c0_i32_0 : i32
    scf.if %2 {
      %cst_10 = arith.constant 0.000000e+00 : f32
      %12 = vector.broadcast %cst_10 : f32 to vector<8x128xf32>
      %c0_11 = arith.constant 0 : index
      %c0_12 = arith.constant 0 : index
      %13 = vector.load %arg7[%c0_11, %c0_12] : memref<8x128xf32, #tpu.memory_space<vmem>>, vector<8x128xf32>
      tpu.vector_store %arg7[%c0_11, %c0_12], %12 {strides = array<i32>} : memref<8x128xf32, #tpu.memory_space<vmem>>, vector<8x128xf32>,
    } else {
    }
    %c0 = arith.constant 0 : index
    %c0_1 = arith.constant 0 : index
    %3 = vector.load %arg7[%c0, %c0_1] : memref<8x128xf32, #tpu.memory_space<vmem>>, vector<8x128xf32>
    %c0_2 = arith.constant 0 : index
    %c0_3 = arith.constant 0 : index
    %4 = vector.load %arg3[%c0_2, %c0_3] : memref<8x128xf32, #tpu.memory_space<vmem>>, vector<8x128xf32>
    %c0_4 = arith.constant 0 : index
    %c0_5 = arith.constant 0 : index
    %5 = vector.load %arg4[%c0_4, %c0_5] : memref<128x128xf32, #tpu.memory_space<vmem>>, vector<128x128xf32>
    %cst = arith.constant dense<0.000000e+00> : vector<8x128xf32>
    %6 = tpu.matmul %4, %5, %cst {dimension_numbers = #tpu.dot_dimension_numbers<[1], [0], [0], [1], [0, 0, 1, 1], [], []>} : vector<8x128xf32>, vector<128x128xf32>, vector<8x128xf32> -> vector<8x128xf32>
    %7 = arith.addf %3, %6 : vector<8x128xf32>
    %c0_6 = arith.constant 0 : index
    %c0_7 = arith.constant 0 : index
    %8 = vector.load %arg7[%c0_6, %c0_7] : memref<8x128xf32, #tpu.memory_space<vmem>>, vector<8x128xf32>
    tpu.vector_store %arg7[%c0_6, %c0_7], %7 {strides = array<i32>} : memref<8x128xf32, #tpu.memory_space<vmem>>, vector<8x128xf32>,
    %c0_i32_8 = arith.constant 0 : i32
    %9 = arith.cmpi eq, %arg2, %c0_i32_8 : i32
    %10 = arith.extui %9 : i1 to i32
    %c0_i32_9 = arith.constant 0 : i32
    %11 = arith.cmpi ne, %10, %c0_i32_9 : i32
    scf.if %11 {
      %c0_10 = arith.constant 0 : index
      %c0_11 = arith.constant 0 : index
      %12 = vector.load %arg7[%c0_10, %c0_11] : memref<8x128xf32, #tpu.memory_space<vmem>>, vector<8x128xf32>
      %c0_12 = arith.constant 0 : index
      %c0_13 = arith.constant 0 : index
      %13 = vector.load %arg5[%c0_12, %c0_13] : memref<1x128xf32, #tpu.memory_space<vmem>>, vector<1x128xf32>
      %14 = vector.broadcast %13 : vector<1x128xf32> to vector<8x128xf32>
      %15 = arith.addf %12, %14 : vector<8x128xf32>
      %c0_14 = arith.constant 0 : index
      %c0_15 = arith.constant 0 : index
      %16 = vector.load %arg6[%c0_14, %c0_15] : memref<8x128xf32, #tpu.memory_space<vmem>>, vector<8x128xf32>
      tpu.vector_store %arg6[%c0_14, %c0_15], %15 {strides = array<i32>} : memref<8x128xf32, #tpu.memory_space<vmem>>, vector<8x128xf32>,
    } else {
    }
    return
  }
  func.func @transform_0(%arg0: i32, %arg1: i32, %arg2: i32) -> (i32, i32) {
    %c0_i32 = arith.constant 0 : i32
    return %arg0, %arg2 : i32, i32
  }
  func.func @transform_1(%arg0: i32, %arg1: i32, %arg2: i32) -> (i32, i32) {
    %c0_i32 = arith.constant 0 : i32
    return %arg2, %arg1 : i32, i32
  }
  func.func @transform_2(%arg0: i32, %arg1: i32, %arg2: i32) -> (i32, i32) {
    %c0_i32 = arith.constant 0 : i32
    %c0_i32_0 = arith.constant 0 : i32
    return %c0_i32, %arg1 : i32, i32
  }
  func.func @transform_3(%arg0: i32, %arg1: i32, %arg2: i32) -> (i32, i32) {
    %c0_i32 = arith.constant 0 : i32
    return %arg0, %arg1 : i32, i32
  }
}

</mosaic_0001>

<llo_original>
// kernel: equi_scan_linear_forward.1
$region0: #{equi_scan_linear_forward.1}
  #allocation0 [shape = 'u32[]', space=smem, size = 0x4, offset = 0x4, fixed_abs, tag = 'smem constant byte address 0x4 - core index']
  #allocation1 [shape = 'u32[144,128]{1,0:T(1,128)}', space=vmem, size = 0x12000, scoped, tag = 'internal scratch']
  #allocation2 [shape = 'f32[8,128]{1,0:T(8,128)}', space=vmem, size = 0x1000, scoped, tag = 'scratch operand']
  %s0 = inlined_call_operand.vmem [shape: f32[8,128], index: 0, kind: input, shape index: {}]
  %s1 = inlined_call_operand.vmem [shape: f32[128,128], index: 1, kind: input, shape index: {}]
  %s2 = inlined_call_operand.vmem [shape: f32[1,128], index: 2, kind: input, shape index: {}]
  %s3 = inlined_call_operand.hbm [shape: f32[8,128], index: 3, kind: output, shape index: {}]
  %s4 = sld [smem:[#allocation0]]
  $region30: #{equi_scan_linear_forward.1} parent=0
    _
  %s6 = ssub.s32 1, %s4
  %s7 = scalar_select 0, %s6, %s4
  $region1: #{equi_scan_linear_forward.1} parent=0
    #allocation3 [shape = 'u8[4096]{0}', space=vmem, size = 0x1000, scoped, tag = 'output window, operand 0, single buffered']
    #allocation4 [shape = 's32[1]{0}', space=sflag, size = 0x4, scoped, tag = 'scoped memory for equi_scan_linear_forward.1']
    %8 = vsyncpa [#allocation4], 0
    // Predicated region
    $region2: #{equi_scan_linear_forward.1} parent=1 // pred_check
      _
    $region3: #{equi_scan_linear_forward.1} parent=1 // pred_check_branch
      %10 = sbr.rel (0) target = $region5
    $region4: #{equi_scan_linear_forward.1} parent=1 // pred_region
      _
    $region5: #{equi_scan_linear_forward.1} parent=1 // pred_fallthru
      _
    // Predicated region
    $region6: #{equi_scan_linear_forward.1} parent=1 // pred_check
      _
    $region7: #{equi_scan_linear_forward.1} parent=1 // pred_check_branch
      %12 = sbr.rel (0) target = $region9
    $region8: #{equi_scan_linear_forward.1} parent=1 // pred_region
      _
    $region9: #{equi_scan_linear_forward.1} parent=1 // pred_fallthru
      _
    // Predicated region
    $region10: #{equi_scan_linear_forward.1} parent=1 // pred_check
      _
    $region11: #{equi_scan_linear_forward.1} parent=1 // pred_check_branch
      %14 = sbr.rel (0) target = $region13
    $region12: #{equi_scan_linear_forward.1} parent=1 // pred_region
      _
    $region13: #{equi_scan_linear_forward.1} parent=1 // pred_fallthru
      _
    %p15 = scmp.eq.s32.totalorder 0, 0
    // Predicated region
    $region14: #{equi_scan_linear_forward.1} parent=1 // pred_check
      %p16 = pneg %p15
    $region15: #{equi_scan_linear_forward.1} parent=1 // pred_check_branch
      %18 = sbr.rel (%p16) target = $region17
    $region16: #{equi_scan_linear_forward.1} parent=1 // pred_region
      %19 = vst [vmem:[#allocation2] sm:$0xff] 0.0
    $region17: #{equi_scan_linear_forward.1} parent=1 // pred_fallthru
      _
    %v20 = vld [vmem:[#allocation2] sm:$0xff]
    %v21 = vld [vmem:[%s0] sm:$0xff]
    %v22 = vld [vmem:[%s1] sm:$0xff]
    %v23 = vld [vmem:[%s1 + $0x8] sm:$0xff]
    %v24 = vld [vmem:[%s1 + $0x10] sm:$0xff]
    %v25 = vld [vmem:[%s1 + $0x18] sm:$0xff]
    %v26 = vld [vmem:[%s1 + $0x20] sm:$0xff]
    %v27 = vld [vmem:[%s1 + $0x28] sm:$0xff]
    %v28 = vld [vmem:[%s1 + $0x30] sm:$0xff]
    %v29 = vld [vmem:[%s1 + $0x38] sm:$0xff]
    %v30 = vld [vmem:[%s1 + $0x40] sm:$0xff]
    %v31 = vld [vmem:[%s1 + $0x48] sm:$0xff]
    %v32 = vld [vmem:[%s1 + $0x50] sm:$0xff]
    %v33 = vld [vmem:[%s1 + $0x58] sm:$0xff]
    %v34 = vld [vmem:[%s1 + $0x60] sm:$0xff]
    %v35 = vld [vmem:[%s1 + $0x68] sm:$0xff]
    %v36 = vld [vmem:[%s1 + $0x70] sm:$0xff]
    %v37 = vld [vmem:[%s1 + $0x78] sm:$0xff]
    %38 = vmatprep.subr.mxu0 0.0
    %39 = vmatpush1.msra.mxu0 %v37
    %40 = vmatprep.subr.mxu0 0.0
    %41 = vmatpush1.msra.mxu0 %v36
    %42 = vmatprep.subr.mxu0 0.0
    %43 = vmatpush1.msra.mxu0 %v35
    %44 = vmatprep.subr.mxu0 0.0
    %45 = vmatpush1.msra.mxu0 %v34
    %46 = vmatprep.subr.mxu0 0.0
    %47 = vmatpush1.msra.mxu0 %v33
    %48 = vmatprep.subr.mxu0 0.0
    %49 = vmatpush1.msra.mxu0 %v32
    %50 = vmatprep.subr.mxu0 0.0
    %51 = vmatpush1.msra.mxu0 %v31
    %52 = vmatprep.subr.mxu0 0.0
    %53 = vmatpush1.msra.mxu0 %v30
    %54 = vmatprep.subr.mxu0 0.0
    %55 = vmatpush1.msra.mxu0 %v29
    %56 = vmatprep.subr.mxu0 0.0
    %57 = vmatpush1.msra.mxu0 %v28
    %58 = vmatprep.subr.mxu0 0.0
    %59 = vmatpush1.msra.mxu0 %v27
    %60 = vmatprep.subr.mxu0 0.0
    %61 = vmatpush1.msra.mxu0 %v26
    %62 = vmatprep.subr.mxu0 0.0
    %63 = vmatpush1.msra.mxu0 %v25
    %64 = vmatprep.subr.mxu0 0.0
    %65 = vmatpush1.msra.mxu0 %v24
    %66 = vmatprep.subr.mxu0 0.0
    %67 = vmatpush1.msra.mxu0 %v23
    %68 = vmatprep.subr.mxu0 0.0
    %69 = vmatpush1.msra.mxu0 %v22
    %70 = vmatprep.subr.mxu0 0.0
    %71 = vmatpush2.msra.mxu0 0.0
    %72 = vmatprep.subr.mxu0 0.0
    %73 = vmatpush2.msra.mxu0 0.0
    %74 = vmatprep.subr.mxu0 0.0
    %75 = vmatpush2.msra.mxu0 0.0
    %76 = vmatprep.subr.mxu0 0.0
    %77 = vmatpush2.msra.mxu0 0.0
    %78 = vmatprep.subr.mxu0 0.0
    %79 = vmatpush2.msra.mxu0 0.0
    %80 = vmatprep.subr.mxu0 0.0
    %81 = vmatpush2.msra.mxu0 0.0
    %82 = vmatprep.subr.mxu0 0.0
    %83 = vmatpush2.msra.mxu0 0.0
    %84 = vmatprep.subr.mxu0 0.0
    %85 = vmatpush2.msra.mxu0 0.0
    %86 = vmatprep.subr.mxu0 0.0
    %87 = vmatpush2.msra.mxu0 0.0
    %88 = vmatprep.subr.mxu0 0.0
    %89 = vmatpush2.msra.mxu0 0.0
    %90 = vmatprep.subr.mxu0 0.0
    %91 = vmatpush2.msra.mxu0 0.0
    %92 = vmatprep.subr.mxu0 0.0
    %93 = vmatpush2.msra.mxu0 0.0
    %94 = vmatprep.subr.mxu0 0.0
    %95 = vmatpush2.msra.mxu0 0.0
    %96 = vmatprep.subr.mxu0 0.0
    %97 = vmatpush2.msra.mxu0 0.0
    %98 = vmatprep.subr.mxu0 0.0
    %99 = vmatpush2.msra.mxu0 0.0
    %100 = vmatprep.subr.mxu0 0.0
    %101 = vmatpush2.msra.mxu0 0.0
    %102 = vmatprep.mubr.f32.mxu0 0.0
    %103 = vmatmul.mubr.f32.gmra.mxu0 %v21
    %v104 = vpop.f32.mrf.mxu0
    %v105 = vadd.f32 0.0, %v104
    %v106 = vpop.f32.mrf.mxu0
    %107 = vdwg.mxu0
    %v108 = vadd.f32 %v20, %v105
    %109 = vst [vmem:[#allocation2] sm:$0xff] %v108
    // Predicated region
    $region18: #{equi_scan_linear_forward.1} parent=1 // pred_check
      %p110 = pneg %p15
    $region19: #{equi_scan_linear_forward.1} parent=1 // pred_check_branch
      %112 = sbr.rel (%p110) target = $region21
    $region20: #{equi_scan_linear_forward.1} parent=1 // pred_region
      %v113 = vld [vmem:[#allocation2] sm:$0xff]
      %v114 = vld [vmem:[%s2] sm:$0x1]
      %v116 = vlaneseq
      %v117 = vshrl.u32 %v116, 7
      %v118 = vsub.s32 0, %v117
      %v119 = vrot.slane %v114, %v118
      %v121 = vadd.f32 %v113, %v119
      %122 = vst [vmem:[#allocation3] sm:$0xff] %v121
    $region21: #{equi_scan_linear_forward.1} parent=1 // pred_fallthru
      _
    // Predicated region
    $region22: #{equi_scan_linear_forward.1} parent=1 // pred_check
      _
    $region23: #{equi_scan_linear_forward.1} parent=1 // pred_check_branch
      %124 = sbr.rel (0) target = $region25
    $region24: #{equi_scan_linear_forward.1} parent=1 // pred_region
      %s126 = ssub.s32 128, 128
      %127 = vsyncadd [#allocation4], %s126
      %s129 = sshll.u32 [#allocation3], 4
      %s130 = int_to_ptr.vmem [resolvable:$true] %s129
      %132 = dma.vmem_to_hbm [thread:$0]  %s130, 128, %s3, [#allocation4]
    $region25: #{equi_scan_linear_forward.1} parent=1 // pred_fallthru
      _
    // Predicated region
    $region26: #{equi_scan_linear_forward.1} parent=1 // pred_check
      _
    $region27: #{equi_scan_linear_forward.1} parent=1 // pred_check_branch
      %134 = sbr.rel (0) target = $region29
    $region28: #{equi_scan_linear_forward.1} parent=1 // pred_region
      %135 = dma.done [#allocation4], 128
    $region29: #{equi_scan_linear_forward.1} parent=1 // pred_fallthru
      _
    %136 = vsyncpa [#allocation4], 1

</llo_original>
